<compile_context>
chip_gen: v6e
topology: v6e:2x2x1
jax: 0.10.0
libtpu: 0.0.40
codegen_flags: <defaults>
</compile_context>

<pallas_src>
import functools
import math

import jax
import jax.numpy as jnp
from jax.experimental import pallas as pl
from jax.experimental.pallas import tpu as pltpu

_MIB = 1024 * 1024


def _round_up(x, m):
    return ((x + m - 1) // m) * m


# --------------------------------------------------------------------------------------------
# One-time weight preparation (hoisted out of the forward path).
# --------------------------------------------------------------------------------------------
def prepare_adapter_params(w_down, b_down, w_up, b_up, *, scale=1.0, param_dtype=None):
    """Pad the bottleneck dim to a multiple of 128 (lane-dense intermediate), fold the static
    adapter scale into up_proj, reshape biases to (1, K) rows, and optionally cast dtypes.

    Zero Wd columns give relu(0 + 0) = 0 and zero Wu rows contribute 0, so padding is exact.
    """
    d_model, bneck = w_down.shape
    bneck2, d_out = w_up.shape
    assert bneck2 == bneck and b_down.shape == (bneck,) and b_up.shape == (d_out,)

    if float(scale) != 1.0:
        w_up = w_up * jnp.asarray(scale, w_up.dtype)
        b_up = b_up * jnp.asarray(scale, b_up.dtype)

    bneck_p = _round_up(bneck, 128)
    if bneck_p != bneck:
        w_down = jnp.pad(w_down, ((0, 0), (0, bneck_p - bneck)))
        b_down = jnp.pad(b_down, (0, bneck_p - bneck))
        w_up = jnp.pad(w_up, ((0, bneck_p - bneck), (0, 0)))

    if param_dtype is not None:
        w_down, b_down, w_up, b_up = (a.astype(param_dtype)
                                      for a in (w_down, b_down, w_up, b_up))

    return (w_down, b_down.reshape(1, bneck_p), w_up, b_up.reshape(1, d_out))


# --------------------------------------------------------------------------------------------
# Kernel
# --------------------------------------------------------------------------------------------
def adapter_kernel(*refs, add_residual, separate_residual):
    if separate_residual:
        x_ref, res_ref, wd_ref, bd_ref, wu_ref, bu_ref, out_ref = refs
    else:
        x_ref, wd_ref, bd_ref, wu_ref, bu_ref, out_ref = refs
        res_ref = None  # residual aliases x (default forward path): no duplicate HBM read

    x = x_ref[...]

    # down = relu(x @ Wd + bd): native-dtype MXU operands, f32 accumulate.
    down = jnp.dot(x, wd_ref[...], preferred_element_type=jnp.float32)
    down = jnp.maximum(down + bd_ref[...].astype(jnp.float32), 0.0)
    # TODO(synk): dropout is identity in eval mode; training-mode dropout would use
    # pltpu.prng_seed + pltpu.prng_random_bits.

    # up = down @ Wu + bu   (the static adapter scale is already folded into Wu / bu)
    up = jnp.dot(down.astype(wu_ref.dtype), wu_ref[...],
                 preferred_element_type=jnp.float32)
    up = up + bu_ref[...].astype(jnp.float32)

    if add_residual:
        res = res_ref[...] if separate_residual else x
        up = up + res.astype(jnp.float32)

    out_ref[...] = up.astype(out_ref.dtype)


# --------------------------------------------------------------------------------------------
# Tiling / VMEM heuristics
# --------------------------------------------------------------------------------------------
def _choose_tile_n(requested, n_rows, d_model, bneck_p, d_out, has_sep_residual,
                   io_bytes, w_bytes, budget_bytes):
    """Pick the largest 16-aligned row tile whose estimated VMEM footprint fits the budget."""
    t = max(16, min(requested, _round_up(n_rows, 16)))

    # Resident weight/bias blocks: constant index_maps mean they are DMA'd only once, but the
    # default pipeline still allocates two buffers -> count x2 (conservative).
    w_foot = 2 * w_bytes * (d_model * bneck_p + bneck_p + bneck_p * d_out + d_out)

    def footprint(t):
        row_cols = d_model + d_out + (d_out if has_sep_residual else 0)
        io = 2 * t * row_cols * io_bytes          # double-buffered x / (residual) / out tiles
        acc = 4 * t * (bneck_p + d_out)           # f32 matmul accumulators
        cast = t * bneck_p * w_bytes              # down -> weight-dtype cast temporary
        return io + acc + cast + w_foot

    while t > 16 and footprint(t) > budget_bytes:
        t = _round_up(max(t // 2, 16), 16)

    # For large N keep >= 2 row blocks so the "parallel" grid axis can shard across v7x's two
    # TensorCores (no-op cost on single-TC v5e/v6e: tiles stay >= 128 rows).
    if n_rows >= 256:
        t = min(t, _round_up(pl.cdiv(n_rows, 2), 16))

    # Single full-extent block when it covers everything (also handles N not 8-aligned).
    if t >= n_rows:
        return n_rows
    return t


def _default_vmem_sizes():
    """Generation-aware VMEM limit/budget. v7x (~64 MiB/TC) -> 48/32 MiB; v5e/v6e (128 MiB)
    -> ~108/92 MiB. Falls back to the conservative 64 MiB assumption if the query fails."""
    vmem_cap = 64 * _MIB
    try:
        vmem_cap = int(pltpu.get_tpu_info().vmem_capacity_bytes)
    except Exception:
        pass
    limit = int(min(vmem_cap - 16 * _MIB, vmem_cap * 0.85))
    budget = int(max(limit - 16 * _MIB, limit // 2))
    return limit, budget


# --------------------------------------------------------------------------------------------
# Wrapper
# --------------------------------------------------------------------------------------------
def adapter_forward(x, params, *, residual=None, add_residual=True,
                    io_dtype=None, tile_n=512,
                    vmem_limit_bytes=None, vmem_budget_bytes=None,
                    interpret=False):
    """x: (..., d_model); params from prepare_adapter_params(); residual: (..., d_out) or None.

    residual=None (the module's default forward) uses the aliased-x fast path and requires
    d_out == d_model. io_dtype=jnp.bfloat16 opts into bf16 activation I/O.
    """
    # TODO(synk): adapter_layernorm_option='in'/'out' (LayerNorm) and learnable_scalar are not
    # implemented; the module defaults ('none', static '1.0') do not use them.
    w_down, b_down2, w_up, b_up2 = params
    d_model, bneck_p = w_down.shape
    d_out = w_up.shape[1]
    assert x.shape[-1] == d_model

    orig_lead = x.shape[:-1]
    x2 = x.reshape(-1, d_model)
    n_rows = x2.shape[0]

    res2 = None
    if add_residual:
        if residual is None or residual is x:
            assert d_out == d_model, "residual=None requires d_out == d_model"
        else:
            assert residual.shape[:-1] == x.shape[:-1] and residual.shape[-1] == d_out
            res2 = residual.reshape(-1, d_out)

    out_dtype = jnp.dtype(io_dtype) if io_dtype is not None else x.dtype
    if io_dtype is not None:
        x2 = x2.astype(io_dtype)
        if res2 is not None:
            res2 = res2.astype(io_dtype)

    if vmem_limit_bytes is None or vmem_budget_bytes is None:
        dflt_limit, dflt_budget = _default_vmem_sizes()
        vmem_limit_bytes = dflt_limit if vmem_limit_bytes is None else vmem_limit_bytes
        vmem_budget_bytes = dflt_budget if vmem_budget_bytes is None else vmem_budget_bytes

    io_bytes = jnp.dtype(x2.dtype).itemsize
    w_bytes = jnp.dtype(w_down.dtype).itemsize
    tile_rows = _choose_tile_n(tile_n, n_rows, d_model, bneck_p, d_out,
                               res2 is not None, io_bytes, w_bytes, vmem_budget_bytes)
    grid_n = pl.cdiv(n_rows, tile_rows)

    in_specs = [pl.BlockSpec((tile_rows, d_model), lambda i: (i, 0))]      # x
    args = [x2]
    if res2 is not None:
        in_specs.append(pl.BlockSpec((tile_rows, d_out), lambda i: (i, 0)))  # residual
        args.append(res2)
    in_specs += [
        pl.BlockSpec((d_model, bneck_p), lambda i: (0, 0)),                # W_down (resident)
        pl.BlockSpec((1, bneck_p), lambda i: (0, 0)),                      # b_down
        pl.BlockSpec((bneck_p, d_out), lambda i: (0, 0)),                  # W_up   (resident)
        pl.BlockSpec((1, d_out), lambda i: (0, 0)),                        # b_up
    ]
    args += [w_down, b_down2, w_up, b_up2]

    kernel = functools.partial(adapter_kernel,
                               add_residual=add_residual,
                               separate_residual=res2 is not None)

    out = pl.pallas_call(
        kernel,
        out_shape=jax.ShapeDtypeStruct((n_rows, d_out), out_dtype),
        grid_spec=pltpu.PrefetchScalarGridSpec(
            num_scalar_prefetch=0,
            grid=(grid_n,),
            in_specs=in_specs,
            out_specs=pl.BlockSpec((tile_rows, d_out), lambda i: (i, 0)),
        ),
        compiler_params=pltpu.CompilerParams(
            dimension_semantics=("parallel",),
            vmem_limit_bytes=int(vmem_limit_bytes),
        ),
        interpret=interpret,
    )(*args)

    return out.reshape(orig_lead + (d_out,))


def init_adapter_params(key, d_model, bottleneck, d_out, dtype=jnp.float32):
    """Deterministic 'lora' init matching the PyTorch __init__."""
    # kaiming_uniform_(down_proj.weight, a=sqrt(5)) on a (bottleneck, d_model) weight:
    #   bound = 1 / sqrt(fan_in), fan_in = d_model
    bound = 1.0 / math.sqrt(d_model)
    w_down_t = jax.random.uniform(key, (bottleneck, d_model),
                                  minval=-bound, maxval=bound, dtype=jnp.float32)
    w_down = jnp.asarray(w_down_t.T, dtype=dtype)               # (d_model, bneck)
    b_down = jnp.zeros((bottleneck,), dtype=dtype)
    w_up = jnp.zeros((bottleneck, d_out), dtype=dtype)          # zeros per lora init
    b_up = jnp.zeros((d_out,), dtype=dtype)
    return w_down, b_down, w_up, b_up


if __name__ == "__main__":
    # Small shapes consistent with the module: batch=2, seq=8, d_model=256, bottleneck=64
    # (the bottleneck is zero-padded to 128 inside prepare_adapter_params for lane density).
    batch, seq, d_model, bneck = 2, 8, 256, 64
    d_out = d_model

    key = jax.random.PRNGKey(0)
    kx, kr, krag, kwd, kbd, kwu, kbu = jax.random.split(key, 7)

    def bf16_exact(a):
        # Quantize to bf16-representable f32 values so the default-precision MXU matmuls and
        # the pure-JAX reference agree to f32 accumulation rounding.
        return a.astype(jnp.bfloat16).astype(jnp.float32)

    x = bf16_exact(jax.random.normal(kx, (batch, seq, d_model), dtype=jnp.float32))

    bound_d = 1.0 / math.sqrt(d_model)
    bound_u = 1.0 / math.sqrt(bneck)
    w_down = bf16_exact(jax.random.uniform(kwd, (d_model, bneck), minval=-bound_d, maxval=bound_d))
    b_down = bf16_exact(jax.random.uniform(kbd, (bneck,), minval=-bound_d, maxval=bound_d))
    w_up = bf16_exact(jax.random.uniform(kwu, (bneck, d_out), minval=-bound_u, maxval=bound_u))
    b_up = bf16_exact(jax.random.uniform(kbu, (d_out,), minval=-bound_u, maxval=bound_u))

    def reference(x_in, residual_in, scale, add_residual=True):
        down = jnp.maximum(x_in @ w_down + b_down, 0.0)
        up = (down @ w_up + b_up) * scale
        return up + residual_in if add_residual else up

    # 1) Default forward (residual=None, scale=1.0) -> aliased-residual fast path.
    params = prepare_adapter_params(w_down, b_down, w_up, b_up, scale=1.0)
    out = jax.block_until_ready(adapter_forward(x, params))
    ref = reference(x, x, 1.0)
    assert out.shape == x.shape and out.dtype == x.dtype
    assert jnp.allclose(out, ref, atol=1e-4, rtol=1e-4)

    # 2) scale != 1.0 is folded into the up_proj weights at prep time.
    params_s = prepare_adapter_params(w_down, b_down, w_up, b_up, scale=0.5)
    out_s = jax.block_until_ready(adapter_forward(x, params_s))
    assert jnp.allclose(out_s, reference(x, x, 0.5), atol=1e-4, rtol=1e-4)

    # 3) Explicit (non-aliased) residual, and add_residual=False.
    residual = bf16_exact(jax.random.normal(kr, x.shape, dtype=jnp.float32))
    out_r = jax.block_until_ready(adapter_forward(x, params, residual=residual))
    assert jnp.allclose(out_r, reference(x, residual, 1.0), atol=1e-4, rtol=1e-4)
    out_nr = jax.block_until_ready(adapter_forward(x, params, add_residual=False))
    assert jnp.allclose(out_nr, reference(x, x, 1.0, add_residual=False), atol=1e-4, rtol=1e-4)

    # 4) Ragged token count (N not a multiple of the row tile): no host pad/slice, last block
    #    relies on Pallas partial-block writeback.
    x_rag = bf16_exact(jax.random.normal(krag, (1, 41, d_model), dtype=jnp.float32))
    out_rag = jax.block_until_ready(adapter_forward(x_rag, params, tile_n=16))
    assert out_rag.shape == x_rag.shape
    assert jnp.allclose(out_rag, reference(x_rag, x_rag, 1.0), atol=1e-4, rtol=1e-4)

    # 5) bf16 I/O path (halves HBM traffic for activations; MXU consumes bf16 natively).
    params_bf = prepare_adapter_params(w_down, b_down, w_up, b_up,
                                       scale=1.0, param_dtype=jnp.bfloat16)
    out_bf = jax.block_until_ready(adapter_forward(x, params_bf, io_dtype=jnp.bfloat16))
    assert out_bf.dtype == jnp.bfloat16
    assert jnp.allclose(out_bf.astype(jnp.float32), ref, atol=1e-1, rtol=1e-1)

    # 6) The module's default 'lora' init (zeroed up_proj) => output == residual exactly.
    w_d0, b_d0, w_u0, b_u0 = init_adapter_params(key, d_model, bneck, d_out)
    params0 = prepare_adapter_params(w_d0, b_d0, w_u0, b_u0)
    out0 = jax.block_until_ready(adapter_forward(x, params0))
    assert jnp.allclose(out0, x, atol=1e-6)

    print("KERNEL_OK")
</pallas_src>

<mosaic_0001>
module attributes {stable_mosaic.version = 11 : i64} {
  func.func @adapter_kernel(%arg0: i32, %arg1: memref<16x256xf32, #tpu.memory_space<vmem>>, %arg2: memref<256x128xf32, #tpu.memory_space<vmem>>, %arg3: memref<1x128xf32, #tpu.memory_space<vmem>>, %arg4: memref<128x256xf32, #tpu.memory_space<vmem>>, %arg5: memref<1x256xf32, #tpu.memory_space<vmem>>, %arg6: memref<16x256xf32, #tpu.memory_space<vmem>>) attributes {dimension_semantics = [#tpu.dimension_semantics<parallel>], iteration_bounds = array<i64: 1>, scalar_prefetch = 0 : i64, scratch_operands = 0 : i64, tpu.core_type = #tpu.core_type<tc>, window_params = [{transform_indices = @transform_0, window_bounds = array<i64: 16, 256>}, {pipeline_mode = #tpu.pipeline_mode<synchronous>, transform_indices = @transform_1, window_bounds = array<i64: 256, 128>}, {pipeline_mode = #tpu.pipeline_mode<synchronous>, transform_indices = @transform_2, window_bounds = array<i64: 1, 128>}, {pipeline_mode = #tpu.pipeline_mode<synchronous>, transform_indices = @transform_3, window_bounds = array<i64: 128, 256>}, {pipeline_mode = #tpu.pipeline_mode<synchronous>, transform_indices = @transform_4, window_bounds = array<i64: 1, 256>}, {transform_indices = @transform_5, window_bounds = array<i64: 16, 256>}]} {
    %c0 = arith.constant 0 : index
    %c0_0 = arith.constant 0 : index
    %0 = vector.load %arg1[%c0, %c0_0] : memref<16x256xf32, #tpu.memory_space<vmem>>, vector<16x256xf32>
    %c0_1 = arith.constant 0 : index
    %c0_2 = arith.constant 0 : index
    %1 = vector.load %arg2[%c0_1, %c0_2] : memref<256x128xf32, #tpu.memory_space<vmem>>, vector<256x128xf32>
    %cst = arith.constant dense<0.000000e+00> : vector<16x128xf32>
    %2 = tpu.matmul %0, %1, %cst {dimension_numbers = #tpu.dot_dimension_numbers<[1], [0], [0], [1], [0, 0, 1, 1], [], []>} : vector<16x256xf32>, vector<256x128xf32>, vector<16x128xf32> -> vector<16x128xf32>
    %c0_3 = arith.constant 0 : index
    %c0_4 = arith.constant 0 : index
    %3 = vector.load %arg3[%c0_3, %c0_4] : memref<1x128xf32, #tpu.memory_space<vmem>>, vector<1x128xf32>
    %4 = vector.broadcast %3 : vector<1x128xf32> to vector<16x128xf32>
    %5 = arith.addf %2, %4 : vector<16x128xf32>
    %cst_5 = arith.constant 0.000000e+00 : f32
    %6 = vector.broadcast %cst_5 : f32 to vector<16x128xf32>
    %7 = arith.maximumf %5, %6 : vector<16x128xf32>
    %c0_6 = arith.constant 0 : index
    %c0_7 = arith.constant 0 : index
    %8 = vector.load %arg4[%c0_6, %c0_7] : memref<128x256xf32, #tpu.memory_space<vmem>>, vector<128x256xf32>
    %cst_8 = arith.constant dense<0.000000e+00> : vector<16x256xf32>
    %9 = tpu.matmul %7, %8, %cst_8 {dimension_numbers = #tpu.dot_dimension_numbers<[1], [0], [0], [1], [0, 0, 1, 1], [], []>} : vector<16x128xf32>, vector<128x256xf32>, vector<16x256xf32> -> vector<16x256xf32>
    %c0_9 = arith.constant 0 : index
    %c0_10 = arith.constant 0 : index
    %10 = vector.load %arg5[%c0_9, %c0_10] : memref<1x256xf32, #tpu.memory_space<vmem>>, vector<1x256xf32>
    %11 = vector.broadcast %10 : vector<1x256xf32> to vector<16x256xf32>
    %12 = arith.addf %9, %11 : vector<16x256xf32>
    %13 = arith.addf %12, %0 : vector<16x256xf32>
    %c0_11 = arith.constant 0 : index
    %c0_12 = arith.constant 0 : index
    %14 = vector.load %arg6[%c0_11, %c0_12] : memref<16x256xf32, #tpu.memory_space<vmem>>, vector<16x256xf32>
    tpu.vector_store %arg6[%c0_11, %c0_12], %13 {strides = array<i32>} : memref<16x256xf32, #tpu.memory_space<vmem>>, vector<16x256xf32>,
    return
  }
  func.func @transform_0(%arg0: i32) -> (i32, i32) {
    %c0_i32 = arith.constant 0 : i32
    %c0_i32_0 = arith.constant 0 : i32
    return %arg0, %c0_i32 : i32, i32
  }
  func.func @transform_1(%arg0: i32) -> (i32, i32) {
    %c0_i32 = arith.constant 0 : i32
    %c0_i32_0 = arith.constant 0 : i32
    %c0_i32_1 = arith.constant 0 : i32
    return %c0_i32, %c0_i32_0 : i32, i32
  }
  func.func @transform_2(%arg0: i32) -> (i32, i32) {
    %c0_i32 = arith.constant 0 : i32
    %c0_i32_0 = arith.constant 0 : i32
    %c0_i32_1 = arith.constant 0 : i32
    return %c0_i32, %c0_i32_0 : i32, i32
  }
  func.func @transform_3(%arg0: i32) -> (i32, i32) {
    %c0_i32 = arith.constant 0 : i32
    %c0_i32_0 = arith.constant 0 : i32
    %c0_i32_1 = arith.constant 0 : i32
    return %c0_i32, %c0_i32_0 : i32, i32
  }
  func.func @transform_4(%arg0: i32) -> (i32, i32) {
    %c0_i32 = arith.constant 0 : i32
    %c0_i32_0 = arith.constant 0 : i32
    %c0_i32_1 = arith.constant 0 : i32
    return %c0_i32, %c0_i32_0 : i32, i32
  }
  func.func @transform_5(%arg0: i32) -> (i32, i32) {
    %c0_i32 = arith.constant 0 : i32
    %c0_i32_0 = arith.constant 0 : i32
    return %arg0, %c0_i32 : i32, i32
  }
}

</mosaic_0001>

<llo_original>
// kernel: tpu_custom_call.1
$region0: #{tpu_custom_call.1}
  #allocation0 [shape = 'u32[]', space=smem, size = 0x4, offset = 0x4, fixed_abs, tag = 'smem constant byte address 0x4 - core index']
  #allocation1 [shape = 'u32[144,128]{1,0:T(1,128)}', space=vmem, size = 0x12000, scoped, tag = 'internal scratch']
  %s0 = inlined_call_operand.hbm [shape: f32[16,256], index: 0, kind: input, shape index: {}]
  %s1 = inlined_call_operand.hbm [shape: f32[256,128], index: 1, kind: input, shape index: {}]
  %s2 = inlined_call_operand.vmem [shape: f32[1,128], index: 2, kind: input, shape index: {}]
  %s3 = inlined_call_operand.hbm [shape: f32[128,256], index: 3, kind: input, shape index: {}]
  %s4 = inlined_call_operand.vmem [shape: f32[1,256], index: 4, kind: input, shape index: {}]
  %s5 = inlined_call_operand.hbm [shape: f32[16,256], index: 5, kind: output, shape index: {}]
  %s6 = sld [smem:[#allocation0]]
  $region42: #{tpu_custom_call.1} parent=0
    _
  %s8 = ssub.s32 1, %s6
  %s9 = scalar_select 0, %s8, %s6
  $region1: #{tpu_custom_call.1} parent=0
    #allocation2 [shape = 'u8[16384]{0}', space=vmem, size = 0x4000, scoped, tag = 'input window, operand 0, single buffered']
    #allocation3 [shape = 's32[1]{0}', space=sflag, size = 0x4, scoped, tag = 'scoped memory for tpu_custom_call.1']
    #allocation4 [shape = 's32[1]{0}', space=sflag, size = 0x4, scoped, tag = 'scoped memory for tpu_custom_call.1']
    #allocation5 [shape = 'u8[131072]{0}', space=vmem, size = 0x20000, scoped, tag = 'input window, operand 1, single buffered']
    #allocation6 [shape = 's32[1]{0}', space=sflag, size = 0x4, scoped, tag = 'scoped memory for tpu_custom_call.1']
    #allocation7 [shape = 'u8[131072]{0}', space=vmem, size = 0x20000, scoped, tag = 'input window, operand 3, single buffered']
    #allocation8 [shape = 'u8[16384]{0}', space=vmem, size = 0x4000, scoped, tag = 'output window, operand 0, single buffered']
    %10 = vsyncpa [#allocation3], 0
    %11 = vsyncpa [#allocation6], 0
    %12 = vsyncpa [#allocation4], 0
    // Predicated region
    $region2: #{tpu_custom_call.1} parent=1 // pred_check
      _
    $region3: #{tpu_custom_call.1} parent=1 // pred_check_branch
      %14 = sbr.rel (0) target = $region5
    $region4: #{tpu_custom_call.1} parent=1 // pred_region
      %s16 = ssub.s32 512, 512
      %17 = vsyncadd [#allocation3], %s16
      %s18 = sshll.u32 [#allocation2], 4
      %s19 = int_to_ptr.vmem [resolvable:$true] %s18
      %24 = dma.hbm_to_vmem [thread:$0]  %s0, 512, %s19, [#allocation3], 256, 256, 16
    $region5: #{tpu_custom_call.1} parent=1 // pred_fallthru
      _
    // Predicated region
    $region6: #{tpu_custom_call.1} parent=1 // pred_check
      _
    $region7: #{tpu_custom_call.1} parent=1 // pred_check_branch
      %26 = sbr.rel (0) target = $region9
    $region8: #{tpu_custom_call.1} parent=1 // pred_region
      %s28 = ssub.s32 4096, 4096
      %29 = vsyncadd [#allocation6], %s28
      %s30 = sshll.u32 [#allocation5], 4
      %s31 = int_to_ptr.vmem [resolvable:$true] %s30
      %36 = dma.hbm_to_vmem [thread:$0]  %s1, 4096, %s31, [#allocation6], 128, 128, 8
    $region9: #{tpu_custom_call.1} parent=1 // pred_fallthru
      _
    // Predicated region
    $region10: #{tpu_custom_call.1} parent=1 // pred_check
      _
    $region11: #{tpu_custom_call.1} parent=1 // pred_check_branch
      %38 = sbr.rel (0) target = $region13
    $region12: #{tpu_custom_call.1} parent=1 // pred_region
      _
    $region13: #{tpu_custom_call.1} parent=1 // pred_fallthru
      _
    // Predicated region
    $region14: #{tpu_custom_call.1} parent=1 // pred_check
      _
    $region15: #{tpu_custom_call.1} parent=1 // pred_check_branch
      %40 = sbr.rel (0) target = $region17
    $region16: #{tpu_custom_call.1} parent=1 // pred_region
      %s42 = ssub.s32 4096, 4096
      %43 = vsyncadd [#allocation6], %s42
      %s44 = sshll.u32 [#allocation7], 4
      %s45 = int_to_ptr.vmem [resolvable:$true] %s44
      %50 = dma.hbm_to_vmem [thread:$0]  %s3, 4096, %s45, [#allocation6], 256, 256, 16
    $region17: #{tpu_custom_call.1} parent=1 // pred_fallthru
      _
    // Predicated region
    $region18: #{tpu_custom_call.1} parent=1 // pred_check
      _
    $region19: #{tpu_custom_call.1} parent=1 // pred_check_branch
      %52 = sbr.rel (0) target = $region21
    $region20: #{tpu_custom_call.1} parent=1 // pred_region
      _
    $region21: #{tpu_custom_call.1} parent=1 // pred_fallthru
      _
    // Predicated region
    $region22: #{tpu_custom_call.1} parent=1 // pred_check
      _
    $region23: #{tpu_custom_call.1} parent=1 // pred_check_branch
      %54 = sbr.rel (0) target = $region25
    $region24: #{tpu_custom_call.1} parent=1 // pred_region
      %55 = dma.done [#allocation3], 512
    $region25: #{tpu_custom_call.1} parent=1 // pred_fallthru
      _
    // Predicated region
    $region26: #{tpu_custom_call.1} parent=1 // pred_check
      _
    $region27: #{tpu_custom_call.1} parent=1 // pred_check_branch
      %57 = sbr.rel (0) target = $region29
    $region28: #{tpu_custom_call.1} parent=1 // pred_region
      %58 = dma.done [#allocation6], 4096
    $region29: #{tpu_custom_call.1} parent=1 // pred_fallthru
      _
    // Predicated region
    $region30: #{tpu_custom_call.1} parent=1 // pred_check
      _
    $region31: #{tpu_custom_call.1} parent=1 // pred_check_branch
      %60 = sbr.rel (0) target = $region33
    $region32: #{tpu_custom_call.1} parent=1 // pred_region
      %61 = dma.done [#allocation6], 4096
    $region33: #{tpu_custom_call.1} parent=1 // pred_fallthru
      _
    %v62 = vld [vmem:[#allocation2] sm:$0xff]
    %v63 = vld [vmem:[#allocation2 + $0x8] sm:$0xff]
    %v64 = vld [vmem:[#allocation2 + $0x10] sm:$0xff]
    %v65 = vld [vmem:[#allocation2 + $0x18] sm:$0xff]
    %v66 = vld [vmem:[#allocation5] sm:$0xff]
    %v67 = vld [vmem:[#allocation5 + $0x8] sm:$0xff]
    %v68 = vld [vmem:[#allocation5 + $0x10] sm:$0xff]
    %v69 = vld [vmem:[#allocation5 + $0x18] sm:$0xff]
    %v70 = vld [vmem:[#allocation5 + $0x20] sm:$0xff]
    %v71 = vld [vmem:[#allocation5 + $0x28] sm:$0xff]
    %v72 = vld [vmem:[#allocation5 + $0x30] sm:$0xff]
    %v73 = vld [vmem:[#allocation5 + $0x38] sm:$0xff]
    %v74 = vld [vmem:[#allocation5 + $0x40] sm:$0xff]
    %v75 = vld [vmem:[#allocation5 + $0x48] sm:$0xff]
    %v76 = vld [vmem:[#allocation5 + $0x50] sm:$0xff]
    %v77 = vld [vmem:[#allocation5 + $0x58] sm:$0xff]
    %v78 = vld [vmem:[#allocation5 + $0x60] sm:$0xff]
    %v79 = vld [vmem:[#allocation5 + $0x68] sm:$0xff]
    %v80 = vld [vmem:[#allocation5 + $0x70] sm:$0xff]
    %v81 = vld [vmem:[#allocation5 + $0x78] sm:$0xff]
    %v82 = vld [vmem:[#allocation5 + $0x80] sm:$0xff]
    %v83 = vld [vmem:[#allocation5 + $0x88] sm:$0xff]
    %v84 = vld [vmem:[#allocation5 + $0x90] sm:$0xff]
    %v85 = vld [vmem:[#allocation5 + $0x98] sm:$0xff]
    %v86 = vld [vmem:[#allocation5 + $0xa0] sm:$0xff]
    %v87 = vld [vmem:[#allocation5 + $0xa8] sm:$0xff]
    %v88 = vld [vmem:[#allocation5 + $0xb0] sm:$0xff]
    %v89 = vld [vmem:[#allocation5 + $0xb8] sm:$0xff]
    %v90 = vld [vmem:[#allocation5 + $0xc0] sm:$0xff]
    %v91 = vld [vmem:[#allocation5 + $0xc8] sm:$0xff]
    %v92 = vld [vmem:[#allocation5 + $0xd0] sm:$0xff]
    %v93 = vld [vmem:[#allocation5 + $0xd8] sm:$0xff]
    %v94 = vld [vmem:[#allocation5 + $0xe0] sm:$0xff]
    %v95 = vld [vmem:[#allocation5 + $0xe8] sm:$0xff]
    %v96 = vld [vmem:[#allocation5 + $0xf0] sm:$0xff]
    %v97 = vld [vmem:[#allocation5 + $0xf8] sm:$0xff]
    %v98 = vld [vmem:[%s2] sm:$0x1]
    %v100 = vlaneseq
    %v101 = vshrl.u32 %v100, 7
    %v102 = vsub.s32 0, %v101
    %v103 = vrot.slane %v98, %v102
    %105 = vmatprep.subr.mxu0 0.0
    %106 = vmatpush1.msra.mxu0 %v81
    %107 = vmatprep.subr.mxu0 0.0
    %108 = vmatpush1.msra.mxu0 %v80
    %109 = vmatprep.subr.mxu0 0.0
    %110 = vmatpush1.msra.mxu0 %v79
    %111 = vmatprep.subr.mxu0 0.0
    %112 = vmatpush1.msra.mxu0 %v78
    %113 = vmatprep.subr.mxu0 0.0
    %114 = vmatpush1.msra.mxu0 %v77
    %115 = vmatprep.subr.mxu0 0.0
    %116 = vmatpush1.msra.mxu0 %v76
    %117 = vmatprep.subr.mxu0 0.0
    %118 = vmatpush1.msra.mxu0 %v75
    %119 = vmatprep.subr.mxu0 0.0
    %120 = vmatpush1.msra.mxu0 %v74
    %121 = vmatprep.subr.mxu0 0.0
    %122 = vmatpush1.msra.mxu0 %v73
    %123 = vmatprep.subr.mxu0 0.0
    %124 = vmatpush1.msra.mxu0 %v72
    %125 = vmatprep.subr.mxu0 0.0
    %126 = vmatpush1.msra.mxu0 %v71
    %127 = vmatprep.subr.mxu0 0.0
    %128 = vmatpush1.msra.mxu0 %v70
    %129 = vmatprep.subr.mxu0 0.0
    %130 = vmatpush1.msra.mxu0 %v69
    %131 = vmatprep.subr.mxu0 0.0
    %132 = vmatpush1.msra.mxu0 %v68
    %133 = vmatprep.subr.mxu0 0.0
    %134 = vmatpush1.msra.mxu0 %v67
    %135 = vmatprep.subr.mxu0 0.0
    %136 = vmatpush1.msra.mxu0 %v66
    %137 = vmatprep.subr.mxu0 0.0
    %138 = vmatpush2.msra.mxu0 %v97
    %139 = vmatprep.subr.mxu0 0.0
    %140 = vmatpush2.msra.mxu0 %v96
    %141 = vmatprep.subr.mxu0 0.0
    %142 = vmatpush2.msra.mxu0 %v95
    %143 = vmatprep.subr.mxu0 0.0
    %144 = vmatpush2.msra.mxu0 %v94
    %145 = vmatprep.subr.mxu0 0.0
    %146 = vmatpush2.msra.mxu0 %v93
    %147 = vmatprep.subr.mxu0 0.0
    %148 = vmatpush2.msra.mxu0 %v92
    %149 = vmatprep.subr.mxu0 0.0
    %150 = vmatpush2.msra.mxu0 %v91
    %151 = vmatprep.subr.mxu0 0.0
    %152 = vmatpush2.msra.mxu0 %v90
    %153 = vmatprep.subr.mxu0 0.0
    %154 = vmatpush2.msra.mxu0 %v89
    %155 = vmatprep.subr.mxu0 0.0
    %156 = vmatpush2.msra.mxu0 %v88
    %157 = vmatprep.subr.mxu0 0.0
    %158 = vmatpush2.msra.mxu0 %v87
    %159 = vmatprep.subr.mxu0 0.0
    %160 = vmatpush2.msra.mxu0 %v86
    %161 = vmatprep.subr.mxu0 0.0
    %162 = vmatpush2.msra.mxu0 %v85
    %163 = vmatprep.subr.mxu0 0.0
    %164 = vmatpush2.msra.mxu0 %v84
    %165 = vmatprep.subr.mxu0 0.0
    %166 = vmatpush2.msra.mxu0 %v83
    %167 = vmatprep.subr.mxu0 0.0
    %168 = vmatpush2.msra.mxu0 %v82
    %169 = vmatprep.mubr.f32.mxu0 %v63
    %170 = vmatmul.mubr.f32.gmra.mxu0 %v62
    %v171 = vpop.f32.mrf.mxu0
    %v172 = vadd.f32 %v103, %v171
    %v173 = vpop.f32.mrf.mxu0
    %174 = vmatprep.mubr.f32.mxu0 %v65
    %175 = vmatmul.mubr.f32.gmra.mxu0 %v64
    %v176 = vpop.f32.mrf.mxu0
    %v177 = vadd.f32 %v103, %v176
    %v178 = vpop.f32.mrf.mxu0
    %179 = vdwg.mxu0
    %v180 = vmax.f32 %v172, 0.0
    %v181 = vmax.f32 %v177, 0.0
    %v182 = vld [vmem:[#allocation7] sm:$0xff]
    %v183 = vld [vmem:[#allocation7 + $0x8] sm:$0xff]
    %v184 = vld [vmem:[#allocation7 + $0x10] sm:$0xff]
    %v185 = vld [vmem:[#allocation7 + $0x18] sm:$0xff]
    %v186 = vld [vmem:[#allocation7 + $0x20] sm:$0xff]
    %v187 = vld [vmem:[#allocation7 + $0x28] sm:$0xff]
    %v188 = vld [vmem:[#allocation7 + $0x30] sm:$0xff]
    %v189 = vld [vmem:[#allocation7 + $0x38] sm:$0xff]
    %v190 = vld [vmem:[#allocation7 + $0x40] sm:$0xff]
    %v191 = vld [vmem:[#allocation7 + $0x48] sm:$0xff]
    %v192 = vld [vmem:[#allocation7 + $0x50] sm:$0xff]
    %v193 = vld [vmem:[#allocation7 + $0x58] sm:$0xff]
    %v194 = vld [vmem:[#allocation7 + $0x60] sm:$0xff]
    %v195 = vld [vmem:[#allocation7 + $0x68] sm:$0xff]
    %v196 = vld [vmem:[#allocation7 + $0x70] sm:$0xff]
    %v197 = vld [vmem:[#allocation7 + $0x78] sm:$0xff]
    %v198 = vld [vmem:[#allocation7 + $0x80] sm:$0xff]
    %v199 = vld [vmem:[#allocation7 + $0x88] sm:$0xff]
    %v200 = vld [vmem:[#allocation7 + $0x90] sm:$0xff]
    %v201 = vld [vmem:[#allocation7 + $0x98] sm:$0xff]
    %v202 = vld [vmem:[#allocation7 + $0xa0] sm:$0xff]
    %v203 = vld [vmem:[#allocation7 + $0xa8] sm:$0xff]
    %v204 = vld [vmem:[#allocation7 + $0xb0] sm:$0xff]
    %v205 = vld [vmem:[#allocation7 + $0xb8] sm:$0xff]
    %v206 = vld [vmem:[#allocation7 + $0xc0] sm:$0xff]
    %v207 = vld [vmem:[#allocation7 + $0xc8] sm:$0xff]
    %v208 = vld [vmem:[#allocation7 + $0xd0] sm:$0xff]
    %v209 = vld [vmem:[#allocation7 + $0xd8] sm:$0xff]
    %v210 = vld [vmem:[#allocation7 + $0xe0] sm:$0xff]
    %v211 = vld [vmem:[#allocation7 + $0xe8] sm:$0xff]
    %v212 = vld [vmem:[#allocation7 + $0xf0] sm:$0xff]
    %v213 = vld [vmem:[#allocation7 + $0xf8] sm:$0xff]
    %v214 = vld [vmem:[%s4] sm:$0x3]
    %v216 = vlaneseq
    %v217 = vshrl.u32 %v216, 7
    %v218 = vsub.s32 0, %v217
    %v219 = vrot.slane %v214, %v218
    %v220 = vlaneseq
    %v221 = vshrl.u32 %v220, 7
    %v222 = vsub.s32 1, %v221
    %v223 = vrot.slane %v214, %v222
    %226 = vmatprep.subr.mxu0 %v213
    %227 = vmatpush1.msra.mxu0 %v212
    %228 = vmatprep.subr.mxu0 %v211
    %229 = vmatpush1.msra.mxu0 %v210
    %230 = vmatprep.subr.mxu0 %v209
    %231 = vmatpush1.msra.mxu0 %v208
    %232 = vmatprep.subr.mxu0 %v207
    %233 = vmatpush1.msra.mxu0 %v206
    %234 = vmatprep.subr.mxu0 %v205
    %235 = vmatpush1.msra.mxu0 %v204
    %236 = vmatprep.subr.mxu0 %v203
    %237 = vmatpush1.msra.mxu0 %v202
    %238 = vmatprep.subr.mxu0 %v201
    %239 = vmatpush1.msra.mxu0 %v200
    %240 = vmatprep.subr.mxu0 %v199
    %241 = vmatpush1.msra.mxu0 %v198
    %242 = vmatprep.subr.mxu0 %v197
    %243 = vmatpush1.msra.mxu0 %v196
    %244 = vmatprep.subr.mxu0 %v195
    %245 = vmatpush1.msra.mxu0 %v194
    %246 = vmatprep.subr.mxu0 %v193
    %247 = vmatpush1.msra.mxu0 %v192
    %248 = vmatprep.subr.mxu0 %v191
    %249 = vmatpush1.msra.mxu0 %v190
    %250 = vmatprep.subr.mxu0 %v189
    %251 = vmatpush1.msra.mxu0 %v188
    %252 = vmatprep.subr.mxu0 %v187
    %253 = vmatpush1.msra.mxu0 %v186
    %254 = vmatprep.subr.mxu0 %v185
    %255 = vmatpush1.msra.mxu0 %v184
    %256 = vmatprep.subr.mxu0 %v183
    %257 = vmatpush1.msra.mxu0 %v182
    %258 = vmatprep.subr.mxu0 0.0
    %259 = vmatpush2.msra.mxu0 0.0
    %260 = vmatprep.subr.mxu0 0.0
    %261 = vmatpush2.msra.mxu0 0.0
    %262 = vmatprep.subr.mxu0 0.0
    %263 = vmatpush2.msra.mxu0 0.0
    %264 = vmatprep.subr.mxu0 0.0
    %265 = vmatpush2.msra.mxu0 0.0
    %266 = vmatprep.subr.mxu0 0.0
    %267 = vmatpush2.msra.mxu0 0.0
    %268 = vmatprep.subr.mxu0 0.0
    %269 = vmatpush2.msra.mxu0 0.0
    %270 = vmatprep.subr.mxu0 0.0
    %271 = vmatpush2.msra.mxu0 0.0
    %272 = vmatprep.subr.mxu0 0.0
    %273 = vmatpush2.msra.mxu0 0.0
    %274 = vmatprep.subr.mxu0 0.0
    %275 = vmatpush2.msra.mxu0 0.0
    %276 = vmatprep.subr.mxu0 0.0
    %277 = vmatpush2.msra.mxu0 0.0
    %278 = vmatprep.subr.mxu0 0.0
    %279 = vmatpush2.msra.mxu0 0.0
    %280 = vmatprep.subr.mxu0 0.0
    %281 = vmatpush2.msra.mxu0 0.0
    %282 = vmatprep.subr.mxu0 0.0
    %283 = vmatpush2.msra.mxu0 0.0
    %284 = vmatprep.subr.mxu0 0.0
    %285 = vmatpush2.msra.mxu0 0.0
    %286 = vmatprep.subr.mxu0 0.0
    %287 = vmatpush2.msra.mxu0 0.0
    %288 = vmatprep.subr.mxu0 0.0
    %289 = vmatpush2.msra.mxu0 0.0
    %290 = vmatprep.mubr.f32.mxu0 0.0
    %291 = vmatmul.mubr.f32.gmra.mxu0 %v180
    %v292 = vpop.f32.mrf.mxu0
    %v293 = vadd.f32 %v219, %v292
    %v294 = vpop.f32.mrf.mxu0
    %v295 = vadd.f32 %v223, %v294
    %296 = vmatprep.mubr.f32.mxu0 0.0
    %297 = vmatmul.mubr.f32.gmra.mxu0 %v181
    %v298 = vpop.f32.mrf.mxu0
    %v299 = vadd.f32 %v219, %v298
    %v300 = vpop.f32.mrf.mxu0
    %v301 = vadd.f32 %v223, %v300
    %302 = vdwg.mxu0
    %v303 = vadd.f32 %v293, %v62
    %v304 = vadd.f32 %v295, %v63
    %v305 = vadd.f32 %v299, %v64
    %v306 = vadd.f32 %v301, %v65
    %307 = vst [vmem:[#allocation8] sm:$0xff] %v303
    %308 = vst [vmem:[#allocation8 + $0x8] sm:$0xff] %v304
    %309 = vst [vmem:[#allocation8 + $0x10] sm:$0xff] %v305
    %310 = vst [vmem:[#allocation8 + $0x18] sm:$0xff] %v306
    // Predicated region
    $region34: #{tpu_custom_call.1} parent=1 // pred_check
      _
    $region35: #{tpu_custom_call.1} parent=1 // pred_check_branch
      %312 = sbr.rel (0) target = $region37
    $region36: #{tpu_custom_call.1} parent=1 // pred_region
      %s314 = ssub.s32 512, 512
      %315 = vsyncadd [#allocation4], %s314
      %s316 = sshll.u32 [#allocation8], 4
      %s317 = int_to_ptr.vmem [resolvable:$true] %s316
      %322 = dma.vmem_to_hbm [thread:$0]  %s317, 512, %s5, [#allocation4], 256, 256, 16
    $region37: #{tpu_custom_call.1} parent=1 // pred_fallthru
      _
    // Predicated region
    $region38: #{tpu_custom_call.1} parent=1 // pred_check
      _
    $region39: #{tpu_custom_call.1} parent=1 // pred_check_branch
      %324 = sbr.rel (0) target = $region41
    $region40: #{tpu_custom_call.1} parent=1 // pred_region
      %325 = dma.done [#allocation4], 512
    $region41: #{tpu_custom_call.1} parent=1 // pred_fallthru
      _
    %326 = vsyncpa [#allocation3], 1
    %327 = vsyncpa [#allocation6], 1
    %328 = vsyncpa [#allocation4], 1

</llo_original>
